<compile_context>
chip_gen: v6e
topology: v6e:2x2x1
jax: 0.10.0
libtpu: 0.0.40
codegen_flags: <defaults>
</compile_context>

<pallas_src>
import jax
import jax.numpy as jnp
from jax.experimental import pallas as pl
from jax.experimental.pallas import tpu as pltpu

LANE = 128
SUBLANE = 8  # f32 sublane packing


def _round_up(x, m):
    return ((x + m - 1) // m) * m


def _cdiv(a, b):
    return (a + b - 1) // b


# ---------------------------------------------------------------------------
# Kernel: fused (conv-band @ fc1) -> relu -> fc2 -> 2*tanh(z/2)
# ---------------------------------------------------------------------------
def offsetnet_kernel(x_ref, m1_ref, b1_ref, w2_ref, b2_ref, out_ref):
    # x_ref:   (TILE_N, C*T)  f32 input rows (streamed, double-buffered)
    # m1_ref:  (C*T, Tp)      fused conv-band @ fc1 weight (VMEM-resident, f32)
    # b1_ref:  (1, Tp)        fused conv/fc1 bias
    # w2_ref:  (Tp, G)        fc2 weight (resident; last dim == full array dim)
    # b2_ref:  (1, G)         fc2 bias
    # out_ref: (TILE_N, G)    narrow output -> tiny HBM writeback
    h = jnp.dot(x_ref[...], m1_ref[...], preferred_element_type=jnp.float32)
    h = jnp.maximum(h + b1_ref[...], 0.0)
    z = jnp.dot(h, w2_ref[...], preferred_element_type=jnp.float32)
    z = z + b2_ref[...]
    # 4*(sigmoid(z) - 0.5) == 2*tanh(z/2): one EUP transcendental + one mul.
    out_ref[...] = (2.0 * jnp.tanh(0.5 * z)).astype(out_ref.dtype)


# ---------------------------------------------------------------------------
# Wrapper-side weight preparation
# ---------------------------------------------------------------------------
def build_conv_band_matrix(conv_w, C, T):
    """M of shape (C*T, T) so that (x.reshape(N, C*T) @ M)[n, t]
    == sum_{c,k} conv_w[0, c, k] * x[n, c, t + k - 1]  (zero padded).

    Vectorized: 3 shifted identities + one einsum (no scatter loops)."""
    shifts = jnp.stack(
        [jnp.eye(T, k=1 - k, dtype=jnp.float32) for k in range(3)])  # (3, T, T)
    M = jnp.einsum('ck,kst->cst', conv_w[0].astype(jnp.float32), shifts)
    return M.reshape(C * T, T)


def _choose_tile(N, tile_n):
    """Batch tile: multiple of 8, >=2 grid steps when the batch allows (v7x
    megacore), and dividing the padded batch to minimize wasted rows."""
    n_rows = _round_up(max(N, 1), SUBLANE)
    tile = min(int(tile_n), _round_up(_cdiv(n_rows, 2), SUBLANE))
    tile = max(tile, SUBLANE)
    num_tiles = _cdiv(n_rows, tile)
    tile = _round_up(_cdiv(n_rows, num_tiles), SUBLANE)
    return tile, tile * num_tiles


def offsetnet_forward(x, params, *, tile_n=2048):
    """x: (N, C, T) float32 -> (N, 1, groups) float32."""
    conv_w, conv_b, fc1_w, fc1_b, fc2_w, fc2_b = params
    N, C, T = x.shape
    G = fc2_w.shape[0]
    CT = C * T

    # ---- Algebraic fusion of conv (as band matmul) into fc1 ----------------
    #   relu((x@M + b_conv) @ W1^T + b1) == relu(x @ (M@W1^T) + b1')
    M = build_conv_band_matrix(conv_w, C, T)                        # (C*T, T)
    w1 = fc1_w.T.astype(jnp.float32)                                # (T, T)
    m1 = M @ w1                                                     # (C*T, T)
    b1f = conv_b[0].astype(jnp.float32) * jnp.sum(w1, axis=0) + fc1_b  # (T,)
    w2 = fc2_w.T.astype(jnp.float32)                                # (T, G)
    b2 = fc2_b.astype(jnp.float32)                                  # (G,)

    # ---- Pad only the resident intermediate dim T -> 128 lanes --------------
    # (output stays narrow at G; writeback was the dominant HBM stream).
    Tp = _round_up(T, LANE)
    m1p = jnp.zeros((CT, Tp), jnp.float32).at[:, :T].set(m1)
    b1p = jnp.zeros((1, Tp), jnp.float32).at[0, :T].set(b1f)
    w2p = jnp.zeros((Tp, G), jnp.float32).at[:T, :].set(w2)
    b2p = b2.reshape(1, G)

    # ---- VMEM-aware batch tile (cap depends on chip generation) ------------
    try:
        vmem_cap = int(pltpu.get_tpu_info().vmem_capacity_bytes)
    except Exception:
        vmem_cap = 64 << 20                      # conservative (v7x per-TC)
    vmem_cap_limit = (vmem_cap * 3) // 4         # ~48 MiB v7x, ~96 MiB v5e/v6e
    resident = (CT * Tp + Tp * G + Tp + G) * 4   # weights + biases (f32)
    row_bytes = 2 * (CT + G) * 4                 # double-buffered x + out rows
    max_tile = max(SUBLANE,
                   (vmem_cap_limit - resident - (8 << 20)) // row_bytes)
    tile, Np = _choose_tile(N, min(int(tile_n), int(max_tile)))

    # Kernel reads native f32 x — no standalone downcast pass over x.
    x2 = x.reshape(N, CT).astype(jnp.float32)
    if Np != N:
        x2 = jnp.pad(x2, ((0, Np - N), (0, 0)))

    grid = (Np // tile,)

    vmem_bytes = 2 * tile * CT * 4 + 2 * tile * G * 4 + resident + (8 << 20)
    vmem_limit = int(min(max(vmem_bytes, 16 << 20), vmem_cap_limit))

    cost = pl.CostEstimate(
        flops=2 * Np * CT * Tp + 2 * Np * Tp * G,
        transcendentals=Np * G,
        bytes_accessed=Np * CT * 4 + Np * G * 4 + resident,
    )

    out = pl.pallas_call(
        offsetnet_kernel,
        out_shape=jax.ShapeDtypeStruct((Np, G), jnp.float32),
        grid=grid,
        in_specs=[
            pl.BlockSpec((tile, CT), lambda i: (i, 0)),   # x streams
            pl.BlockSpec((CT, Tp), lambda i: (0, 0)),     # weights resident
            pl.BlockSpec((1, Tp), lambda i: (0, 0)),
            pl.BlockSpec((Tp, G), lambda i: (0, 0)),
            pl.BlockSpec((1, G), lambda i: (0, 0)),
        ],
        out_specs=pl.BlockSpec((tile, G), lambda i: (i, 0)),
        compiler_params=pltpu.CompilerParams(
            dimension_semantics=("parallel",),
            vmem_limit_bytes=vmem_limit,
        ),
        cost_estimate=cost,
    )(x2, m1p, b1p, w2p, b2p)

    return out[:N].reshape(N, 1, G)


# ---------------------------------------------------------------------------
# Pure-JAX reference matching the PyTorch module
# ---------------------------------------------------------------------------
def reference_forward(x, params):
    conv_w, conv_b, fc1_w, fc1_b, fc2_w, fc2_b = params
    N, C, T = x.shape
    xp = jnp.pad(x, ((0, 0), (0, 0), (1, 1)))
    y = jnp.zeros((N, T), dtype=jnp.float32)
    for k in range(3):
        y = y + jnp.einsum('nct,c->nt', xp[:, :, k:k + T], conv_w[0, :, k])
    y = y + conv_b[0]
    h = jnp.maximum(y @ fc1_w.T + fc1_b, 0.0)
    z = h @ fc2_w.T + fc2_b
    return (4.0 * (jax.nn.sigmoid(z) - 0.5)).reshape(N, 1, -1)


def init_params(key, in_channels, groups, num_segments):
    """Deterministic synthetic parameters (shapes match the PyTorch module)."""
    k = jax.random.split(key, 5)
    conv_w = jax.random.normal(k[0], (1, in_channels, 3), jnp.float32) * 0.2
    conv_b = jax.random.normal(k[1], (1,), jnp.float32) * 0.1
    fc1_w = jax.random.normal(k[2], (num_segments, num_segments), jnp.float32) * 0.2
    fc1_b = jax.random.normal(k[3], (num_segments,), jnp.float32) * 0.1
    fc2_w = jax.random.normal(k[4], (groups, num_segments), jnp.float32) * 0.2
    fc2_b = jnp.full((groups,), 0.5108, jnp.float32)  # init_weights(): bias = 0.5108
    return (conv_w, conv_b, fc1_w, fc1_b, fc2_w, fc2_b)


if __name__ == "__main__":
    in_channels = 4
    groups = 4
    num_segments = 8
    batch = 2

    key = jax.random.PRNGKey(0)
    kx, kp = jax.random.split(key)
    x = jax.random.normal(kx, (batch, in_channels, num_segments), jnp.float32)
    params = init_params(kp, in_channels, groups, num_segments)

    # Small-batch correctness check (single grid step).
    ref = reference_forward(x, params)
    out = jax.block_until_ready(offsetnet_forward(x, params))
    assert out.shape == (batch, 1, groups), out.shape
    assert jnp.allclose(out, ref, atol=1e-4, rtol=1e-4), (out, ref)

    # Larger batch exercises a multi-step grid (>=2 tiles -> both v7x TCs).
    batch_big = 4096
    x_big = jax.random.normal(kx, (batch_big, in_channels, num_segments),
                              jnp.float32)
    ref_big = reference_forward(x_big, params)
    out_big = jax.block_until_ready(
        offsetnet_forward(x_big, params, tile_n=1024))
    assert out_big.shape == (batch_big, 1, groups), out_big.shape
    assert jnp.allclose(out_big, ref_big, atol=1e-4, rtol=1e-4)

    print("KERNEL_OK")
</pallas_src>

<mosaic_0001>
module attributes {stable_mosaic.version = 11 : i64} {
  func.func @offsetnet_kernel(%arg0: i32, %arg1: memref<8x32xf32, #tpu.memory_space<vmem>>, %arg2: memref<32x128xf32, #tpu.memory_space<vmem>>, %arg3: memref<1x128xf32, #tpu.memory_space<vmem>>, %arg4: memref<128x4xf32, #tpu.memory_space<vmem>>, %arg5: memref<1x4xf32, #tpu.memory_space<vmem>>, %arg6: memref<8x4xf32, #tpu.memory_space<vmem>>) attributes {dimension_semantics = [#tpu.dimension_semantics<parallel>], iteration_bounds = array<i64: 1>, scalar_prefetch = 0 : i64, scratch_operands = 0 : i64, tpu.core_type = #tpu.core_type<tc>, window_params = [{transform_indices = @transform_0, window_bounds = array<i64: 8, 32>}, {pipeline_mode = #tpu.pipeline_mode<synchronous>, transform_indices = @transform_1, window_bounds = array<i64: 32, 128>}, {pipeline_mode = #tpu.pipeline_mode<synchronous>, transform_indices = @transform_2, window_bounds = array<i64: 1, 128>}, {pipeline_mode = #tpu.pipeline_mode<synchronous>, transform_indices = @transform_3, window_bounds = array<i64: 128, 4>}, {pipeline_mode = #tpu.pipeline_mode<synchronous>, transform_indices = @transform_4, window_bounds = array<i64: 1, 4>}, {transform_indices = @transform_5, window_bounds = array<i64: 8, 4>}]} {
    %c0 = arith.constant 0 : index
    %c0_0 = arith.constant 0 : index
    %0 = vector.load %arg1[%c0, %c0_0] : memref<8x32xf32, #tpu.memory_space<vmem>>, vector<8x32xf32>
    %c0_1 = arith.constant 0 : index
    %c0_2 = arith.constant 0 : index
    %1 = vector.load %arg2[%c0_1, %c0_2] : memref<32x128xf32, #tpu.memory_space<vmem>>, vector<32x128xf32>
    %cst = arith.constant dense<0.000000e+00> : vector<8x128xf32>
    %2 = tpu.matmul %0, %1, %cst {dimension_numbers = #tpu.dot_dimension_numbers<[1], [0], [0], [1], [0, 0, 1, 1], [], []>} : vector<8x32xf32>, vector<32x128xf32>, vector<8x128xf32> -> vector<8x128xf32>
    %c0_3 = arith.constant 0 : index
    %c0_4 = arith.constant 0 : index
    %3 = vector.load %arg3[%c0_3, %c0_4] : memref<1x128xf32, #tpu.memory_space<vmem>>, vector<1x128xf32>
    %4 = vector.broadcast %3 : vector<1x128xf32> to vector<8x128xf32>
    %5 = arith.addf %2, %4 : vector<8x128xf32>
    %cst_5 = arith.constant 0.000000e+00 : f32
    %6 = vector.broadcast %cst_5 : f32 to vector<8x128xf32>
    %7 = arith.maximumf %5, %6 : vector<8x128xf32>
    %c0_6 = arith.constant 0 : index
    %c0_7 = arith.constant 0 : index
    %8 = vector.load %arg4[%c0_6, %c0_7] : memref<128x4xf32, #tpu.memory_space<vmem>>, vector<128x4xf32>
    %cst_8 = arith.constant dense<0.000000e+00> : vector<8x4xf32>
    %9 = tpu.matmul %7, %8, %cst_8 {dimension_numbers = #tpu.dot_dimension_numbers<[1], [0], [0], [1], [0, 0, 1, 1], [], []>} : vector<8x128xf32>, vector<128x4xf32>, vector<8x4xf32> -> vector<8x4xf32>
    %c0_9 = arith.constant 0 : index
    %c0_10 = arith.constant 0 : index
    %10 = vector.load %arg5[%c0_9, %c0_10] : memref<1x4xf32, #tpu.memory_space<vmem>>, vector<1x4xf32>
    %11 = vector.broadcast %10 : vector<1x4xf32> to vector<8x4xf32>
    %12 = arith.addf %9, %11 : vector<8x4xf32>
    %cst_11 = arith.constant 5.000000e-01 : f32
    %13 = vector.broadcast %cst_11 : f32 to vector<8x4xf32>
    %14 = arith.mulf %13, %12 : vector<8x4xf32>
    %15 = math.tanh %14 : vector<8x4xf32>
    %cst_12 = arith.constant 2.000000e+00 : f32
    %16 = vector.broadcast %cst_12 : f32 to vector<8x4xf32>
    %17 = arith.mulf %16, %15 : vector<8x4xf32>
    %c0_13 = arith.constant 0 : index
    %c0_14 = arith.constant 0 : index
    %18 = vector.load %arg6[%c0_13, %c0_14] : memref<8x4xf32, #tpu.memory_space<vmem>>, vector<8x4xf32>
    tpu.vector_store %arg6[%c0_13, %c0_14], %17 {strides = array<i32>} : memref<8x4xf32, #tpu.memory_space<vmem>>, vector<8x4xf32>,
    return
  }
  func.func @transform_0(%arg0: i32) -> (i32, i32) {
    %c0_i32 = arith.constant 0 : i32
    %c0_i32_0 = arith.constant 0 : i32
    return %arg0, %c0_i32 : i32, i32
  }
  func.func @transform_1(%arg0: i32) -> (i32, i32) {
    %c0_i32 = arith.constant 0 : i32
    %c0_i32_0 = arith.constant 0 : i32
    %c0_i32_1 = arith.constant 0 : i32
    return %c0_i32, %c0_i32_0 : i32, i32
  }
  func.func @transform_2(%arg0: i32) -> (i32, i32) {
    %c0_i32 = arith.constant 0 : i32
    %c0_i32_0 = arith.constant 0 : i32
    %c0_i32_1 = arith.constant 0 : i32
    return %c0_i32, %c0_i32_0 : i32, i32
  }
  func.func @transform_3(%arg0: i32) -> (i32, i32) {
    %c0_i32 = arith.constant 0 : i32
    %c0_i32_0 = arith.constant 0 : i32
    %c0_i32_1 = arith.constant 0 : i32
    return %c0_i32, %c0_i32_0 : i32, i32
  }
  func.func @transform_4(%arg0: i32) -> (i32, i32) {
    %c0_i32 = arith.constant 0 : i32
    %c0_i32_0 = arith.constant 0 : i32
    %c0_i32_1 = arith.constant 0 : i32
    return %c0_i32, %c0_i32_0 : i32, i32
  }
  func.func @transform_5(%arg0: i32) -> (i32, i32) {
    %c0_i32 = arith.constant 0 : i32
    %c0_i32_0 = arith.constant 0 : i32
    return %arg0, %c0_i32 : i32, i32
  }
}

</mosaic_0001>

<llo_original>
// kernel: tpu_custom_call.1
$region0: #{tpu_custom_call.1}
  #allocation0 [shape = 'u32[]', space=smem, size = 0x4, offset = 0x4, fixed_abs, tag = 'smem constant byte address 0x4 - core index']
  #allocation1 [shape = 'u32[144,128]{1,0:T(1,128)}', space=vmem, size = 0x12000, scoped, tag = 'internal scratch']
  %s0 = inlined_call_operand.vmem [shape: f32[8,32], index: 0, kind: input, shape index: {}]
  %s1 = inlined_call_operand.vmem [shape: f32[32,128], index: 1, kind: input, shape index: {}]
  %s2 = inlined_call_operand.vmem [shape: f32[1,128], index: 2, kind: input, shape index: {}]
  %s3 = inlined_call_operand.vmem [shape: f32[128,4], index: 3, kind: input, shape index: {}]
  %s4 = inlined_call_operand.vmem [shape: f32[1,4], index: 4, kind: input, shape index: {}]
  %s5 = inlined_call_operand.vmem [shape: f32[8,4], index: 5, kind: output, shape index: {}]
  %s6 = sld [smem:[#allocation0]]
  $region30: #{tpu_custom_call.1} parent=0
    _
  %s8 = ssub.s32 1, %s6
  %s9 = scalar_select 0, %s8, %s6
  // Predicated region
  $region2: #{tpu_custom_call.1} parent=0 // pred_check
    _
  $region3: #{tpu_custom_call.1} parent=0 // pred_check_branch
    %11 = sbr.rel (0) target = $region5
  $region4: #{tpu_custom_call.1} parent=0 // pred_region
    _
  $region5: #{tpu_custom_call.1} parent=0 // pred_fallthru
    _
  // Predicated region
  $region6: #{tpu_custom_call.1} parent=0 // pred_check
    _
  $region7: #{tpu_custom_call.1} parent=0 // pred_check_branch
    %13 = sbr.rel (0) target = $region9
  $region8: #{tpu_custom_call.1} parent=0 // pred_region
    _
  $region9: #{tpu_custom_call.1} parent=0 // pred_fallthru
    _
  // Predicated region
  $region10: #{tpu_custom_call.1} parent=0 // pred_check
    _
  $region11: #{tpu_custom_call.1} parent=0 // pred_check_branch
    %15 = sbr.rel (0) target = $region13
  $region12: #{tpu_custom_call.1} parent=0 // pred_region
    _
  $region13: #{tpu_custom_call.1} parent=0 // pred_fallthru
    _
  // Predicated region
  $region14: #{tpu_custom_call.1} parent=0 // pred_check
    _
  $region15: #{tpu_custom_call.1} parent=0 // pred_check_branch
    %17 = sbr.rel (0) target = $region17
  $region16: #{tpu_custom_call.1} parent=0 // pred_region
    _
  $region17: #{tpu_custom_call.1} parent=0 // pred_fallthru
    _
  // Predicated region
  $region18: #{tpu_custom_call.1} parent=0 // pred_check
    _
  $region19: #{tpu_custom_call.1} parent=0 // pred_check_branch
    %19 = sbr.rel (0) target = $region21
  $region20: #{tpu_custom_call.1} parent=0 // pred_region
    _
  $region21: #{tpu_custom_call.1} parent=0 // pred_fallthru
    _
  %v20 = vld [vmem:[%s0] sm:$0xff]
  %v21 = vld [vmem:[%s1] sm:$0xff]
  %v22 = vld [vmem:[%s1 + $0x8] sm:$0xff]
  %v23 = vld [vmem:[%s1 + $0x10] sm:$0xff]
  %v24 = vld [vmem:[%s1 + $0x18] sm:$0xff]
  %v25 = vld [vmem:[%s2] sm:$0x1]
  %v27 = vlaneseq
  %v28 = vshrl.u32 %v27, 7
  %v29 = vsub.s32 0, %v28
  %v30 = vrot.slane %v25, %v29
  %vm32 = vcmask 261120
  %v34 = vsel %vm32, %v20, 0
  %36 = vmatprep.subr.mxu0 0.0
  %37 = vmatpush1.msra.mxu0 0.0
  %38 = vmatprep.subr.mxu0 0.0
  %39 = vmatpush1.msra.mxu0 0.0
  %40 = vmatprep.subr.mxu0 0.0
  %41 = vmatpush1.msra.mxu0 0.0
  %42 = vmatprep.subr.mxu0 0.0
  %43 = vmatpush1.msra.mxu0 0.0
  %44 = vmatprep.subr.mxu0 0.0
  %45 = vmatpush1.msra.mxu0 0.0
  %46 = vmatprep.subr.mxu0 0.0
  %47 = vmatpush1.msra.mxu0 0.0
  %48 = vmatprep.subr.mxu0 0.0
  %49 = vmatpush1.msra.mxu0 0.0
  %50 = vmatprep.subr.mxu0 0.0
  %51 = vmatpush1.msra.mxu0 0.0
  %52 = vmatprep.subr.mxu0 0.0
  %53 = vmatpush1.msra.mxu0 0.0
  %54 = vmatprep.subr.mxu0 0.0
  %55 = vmatpush1.msra.mxu0 0.0
  %56 = vmatprep.subr.mxu0 0.0
  %57 = vmatpush1.msra.mxu0 0.0
  %58 = vmatprep.subr.mxu0 0.0
  %59 = vmatpush1.msra.mxu0 0.0
  %60 = vmatprep.subr.mxu0 0.0
  %61 = vmatpush1.msra.mxu0 %v24
  %62 = vmatprep.subr.mxu0 0.0
  %63 = vmatpush1.msra.mxu0 %v23
  %64 = vmatprep.subr.mxu0 0.0
  %65 = vmatpush1.msra.mxu0 %v22
  %66 = vmatprep.subr.mxu0 0.0
  %67 = vmatpush1.msra.mxu0 %v21
  %68 = vmatprep.subr.mxu0 0.0
  %69 = vmatpush2.msra.mxu0 0.0
  %70 = vmatprep.subr.mxu0 0.0
  %71 = vmatpush2.msra.mxu0 0.0
  %72 = vmatprep.subr.mxu0 0.0
  %73 = vmatpush2.msra.mxu0 0.0
  %74 = vmatprep.subr.mxu0 0.0
  %75 = vmatpush2.msra.mxu0 0.0
  %76 = vmatprep.subr.mxu0 0.0
  %77 = vmatpush2.msra.mxu0 0.0
  %78 = vmatprep.subr.mxu0 0.0
  %79 = vmatpush2.msra.mxu0 0.0
  %80 = vmatprep.subr.mxu0 0.0
  %81 = vmatpush2.msra.mxu0 0.0
  %82 = vmatprep.subr.mxu0 0.0
  %83 = vmatpush2.msra.mxu0 0.0
  %84 = vmatprep.subr.mxu0 0.0
  %85 = vmatpush2.msra.mxu0 0.0
  %86 = vmatprep.subr.mxu0 0.0
  %87 = vmatpush2.msra.mxu0 0.0
  %88 = vmatprep.subr.mxu0 0.0
  %89 = vmatpush2.msra.mxu0 0.0
  %90 = vmatprep.subr.mxu0 0.0
  %91 = vmatpush2.msra.mxu0 0.0
  %92 = vmatprep.subr.mxu0 0.0
  %93 = vmatpush2.msra.mxu0 0.0
  %94 = vmatprep.subr.mxu0 0.0
  %95 = vmatpush2.msra.mxu0 0.0
  %96 = vmatprep.subr.mxu0 0.0
  %97 = vmatpush2.msra.mxu0 0.0
  %98 = vmatprep.subr.mxu0 0.0
  %99 = vmatpush2.msra.mxu0 0.0
  %100 = vmatprep.mubr.f32.mxu0 0.0
  %101 = vmatmul.mubr.f32.gmra.mxu0 %v34
  %v102 = vpop.f32.mrf.mxu0
  %v103 = vadd.f32 %v30, %v102
  %v104 = vpop.f32.mrf.mxu0
  %105 = vdwg.mxu0
  %v106 = vmax.f32 %v103, 0.0
  %v107 = vld [vmem:[%s3] sm:$0xff]
  %v108 = vld [vmem:[%s3 + $0x8] sm:$0xff]
  %v109 = vld [vmem:[%s3 + $0x10] sm:$0xff]
  %v110 = vld [vmem:[%s3 + $0x18] sm:$0xff]
  %v111 = vld [vmem:[%s3 + $0x20] sm:$0xff]
  %v112 = vld [vmem:[%s3 + $0x28] sm:$0xff]
  %v113 = vld [vmem:[%s3 + $0x30] sm:$0xff]
  %v114 = vld [vmem:[%s3 + $0x38] sm:$0xff]
  %v115 = vld [vmem:[%s3 + $0x40] sm:$0xff]
  %v116 = vld [vmem:[%s3 + $0x48] sm:$0xff]
  %v117 = vld [vmem:[%s3 + $0x50] sm:$0xff]
  %v118 = vld [vmem:[%s3 + $0x58] sm:$0xff]
  %v119 = vld [vmem:[%s3 + $0x60] sm:$0xff]
  %v120 = vld [vmem:[%s3 + $0x68] sm:$0xff]
  %v121 = vld [vmem:[%s3 + $0x70] sm:$0xff]
  %v122 = vld [vmem:[%s3 + $0x78] sm:$0xff]
  %v123 = vld [vmem:[%s4] sm:$0x1]
  %v125 = vlaneseq
  %v126 = vshrl.u32 %v125, 7
  %v127 = vsub.s32 0, %v126
  %v128 = vrot.slane %v123, %v127
  %130 = vmatprep.subr.mxu0 0.0
  %131 = vmatpush1.msra.mxu0 %v122
  %132 = vmatprep.subr.mxu0 0.0
  %133 = vmatpush1.msra.mxu0 %v121
  %134 = vmatprep.subr.mxu0 0.0
  %135 = vmatpush1.msra.mxu0 %v120
  %136 = vmatprep.subr.mxu0 0.0
  %137 = vmatpush1.msra.mxu0 %v119
  %138 = vmatprep.subr.mxu0 0.0
  %139 = vmatpush1.msra.mxu0 %v118
  %140 = vmatprep.subr.mxu0 0.0
  %141 = vmatpush1.msra.mxu0 %v117
  %142 = vmatprep.subr.mxu0 0.0
  %143 = vmatpush1.msra.mxu0 %v116
  %144 = vmatprep.subr.mxu0 0.0
  %145 = vmatpush1.msra.mxu0 %v115
  %146 = vmatprep.subr.mxu0 0.0
  %147 = vmatpush1.msra.mxu0 %v114
  %148 = vmatprep.subr.mxu0 0.0
  %149 = vmatpush1.msra.mxu0 %v113
  %150 = vmatprep.subr.mxu0 0.0
  %151 = vmatpush1.msra.mxu0 %v112
  %152 = vmatprep.subr.mxu0 0.0
  %153 = vmatpush1.msra.mxu0 %v111
  %154 = vmatprep.subr.mxu0 0.0
  %155 = vmatpush1.msra.mxu0 %v110
  %156 = vmatprep.subr.mxu0 0.0
  %157 = vmatpush1.msra.mxu0 %v109
  %158 = vmatprep.subr.mxu0 0.0
  %159 = vmatpush1.msra.mxu0 %v108
  %160 = vmatprep.subr.mxu0 0.0
  %161 = vmatpush1.msra.mxu0 %v107
  %162 = vmatprep.subr.mxu0 0.0
  %163 = vmatpush2.msra.mxu0 0.0
  %164 = vmatprep.subr.mxu0 0.0
  %165 = vmatpush2.msra.mxu0 0.0
  %166 = vmatprep.subr.mxu0 0.0
  %167 = vmatpush2.msra.mxu0 0.0
  %168 = vmatprep.subr.mxu0 0.0
  %169 = vmatpush2.msra.mxu0 0.0
  %170 = vmatprep.subr.mxu0 0.0
  %171 = vmatpush2.msra.mxu0 0.0
  %172 = vmatprep.subr.mxu0 0.0
  %173 = vmatpush2.msra.mxu0 0.0
  %174 = vmatprep.subr.mxu0 0.0
  %175 = vmatpush2.msra.mxu0 0.0
  %176 = vmatprep.subr.mxu0 0.0
  %177 = vmatpush2.msra.mxu0 0.0
  %178 = vmatprep.subr.mxu0 0.0
  %179 = vmatpush2.msra.mxu0 0.0
  %180 = vmatprep.subr.mxu0 0.0
  %181 = vmatpush2.msra.mxu0 0.0
  %182 = vmatprep.subr.mxu0 0.0
  %183 = vmatpush2.msra.mxu0 0.0
  %184 = vmatprep.subr.mxu0 0.0
  %185 = vmatpush2.msra.mxu0 0.0
  %186 = vmatprep.subr.mxu0 0.0
  %187 = vmatpush2.msra.mxu0 0.0
  %188 = vmatprep.subr.mxu0 0.0
  %189 = vmatpush2.msra.mxu0 0.0
  %190 = vmatprep.subr.mxu0 0.0
  %191 = vmatpush2.msra.mxu0 0.0
  %192 = vmatprep.subr.mxu0 0.0
  %193 = vmatpush2.msra.mxu0 0.0
  %194 = vmatprep.mubr.f32.mxu0 0.0
  %195 = vmatmul.mubr.f32.gmra.mxu0 %v106
  %v196 = vpop.f32.mrf.mxu0
  %v197 = vadd.f32 %v128, %v196
  %v198 = vpop.f32.mrf.mxu0
  %199 = vdwg.mxu0
  %v200 = vmul.f32 %v197, 0.5
  %v201 = vtanh.pop %v200
  %v202 = vmul.f32 %v201, 2.0
  %vm203 = vcmask 31744
  %204 = vst.msk [vmem:[%s5] sm:$0xff] %vm203, %v202
  // Predicated region
  $region22: #{tpu_custom_call.1} parent=0 // pred_check
    _
  $region23: #{tpu_custom_call.1} parent=0 // pred_check_branch
    %206 = sbr.rel (0) target = $region25
  $region24: #{tpu_custom_call.1} parent=0 // pred_region
    _
  $region25: #{tpu_custom_call.1} parent=0 // pred_fallthru
    _
  // Predicated region
  $region26: #{tpu_custom_call.1} parent=0 // pred_check
    _
  $region27: #{tpu_custom_call.1} parent=0 // pred_check_branch
    %208 = sbr.rel (0) target = $region29
  $region28: #{tpu_custom_call.1} parent=0 // pred_region
    _
  $region29: #{tpu_custom_call.1} parent=0 // pred_fallthru
    _

</llo_original>
